<compile_context>
chip_gen: v6e
topology: v6e:2x2x1
jax: 0.10.0
libtpu: 0.0.40
codegen_flags: <defaults>
</compile_context>

<pallas_src>
import functools

import jax
import jax.numpy as jnp
from jax.experimental import pallas as pl
from jax.experimental.pallas import tpu as pltpu


def _pooling_kernel(x_ref, o_ref, *, inv_k):
    # x_ref: (rows, K, G) block — K on sublanes, G on lanes.
    x = x_ref[...]
    mx = jnp.max(x, axis=1)                       # (rows, G), native dtype
    s = jnp.sum(x.astype(jnp.float32), axis=1)    # (rows, G), f32 accumulation
    o_ref[...] = (mx.astype(jnp.float32) + s * inv_k).astype(o_ref.dtype)


def _choose_g_tile(G: int) -> int:
    # G stays on the lane axis; only tile it if it is a clean multiple of 128.
    if G % 128 != 0:
        return G
    for cand in (512, 256, 128):
        if G % cand == 0:
            return cand
    return G


def _choose_rows_tile(BC: int, per_row_bytes: int,
                      target_bytes: int = 2 * 1024 * 1024) -> int:
    """Largest divisor of BC keeping the block under ~target_bytes while
    satisfying the (8, 128) sublane rule on the 2-D output block."""
    max_rows = max(1, target_bytes // max(1, per_row_bytes))
    valid = [d for d in range(1, BC + 1)
             if BC % d == 0 and (d % 8 == 0 or d == BC)]
    fitting = [d for d in valid if d <= max_rows]
    if fitting:
        return max(fitting)
    return min(valid)   # nothing fits the target -> smallest legal block


def pooling(knn_x_w: jax.Array) -> jax.Array:
    """knn_x_w: (B, C, G, K) -> (B, C, G)   max(-1) + mean(-1)"""
    B, C, G, K = knn_x_w.shape
    BC = B * C

    # Layout fix: (B, C, G, K) -> (B*C, K, G): K -> sublanes, G -> lanes.
    x = jnp.transpose(knn_x_w, (0, 1, 3, 2)).reshape(BC, K, G)

    itemsize = jnp.dtype(knn_x_w.dtype).itemsize
    g_tile = _choose_g_tile(G)
    rows_tile = _choose_rows_tile(BC, K * g_tile * itemsize)
    grid = (BC // rows_tile, G // g_tile)

    kernel = functools.partial(_pooling_kernel, inv_k=1.0 / float(K))

    out = pl.pallas_call(
        kernel,
        out_shape=jax.ShapeDtypeStruct((BC, G), knn_x_w.dtype),
        grid_spec=pltpu.PrefetchScalarGridSpec(
            num_scalar_prefetch=0,
            grid=grid,
            in_specs=[
                pl.BlockSpec((rows_tile, K, g_tile), lambda r, g: (r, 0, g)),
            ],
            out_specs=pl.BlockSpec((rows_tile, g_tile), lambda r, g: (r, g)),
        ),
        compiler_params=pltpu.CompilerParams(
            dimension_semantics=("parallel", "parallel"),
        ),
    )(x)
    return out.reshape(B, C, G)


if __name__ == "__main__":
    key = jax.random.PRNGKey(0)
    # Small shapes consistent with the forward: (B, C, G, K)
    B, C, G, K = 2, 4, 16, 8
    knn_x_w = jax.random.normal(key, (B, C, G, K), dtype=jnp.float32)

    out = pooling(knn_x_w)
    out = jax.block_until_ready(out)

    # Reference check in plain JAX
    ref = jnp.max(knn_x_w, axis=-1) + jnp.mean(knn_x_w, axis=-1)
    assert out.shape == (B, C, G)
    assert jnp.allclose(out, ref, atol=1e-5, rtol=1e-5), "mismatch vs reference"

    print("KERNEL_OK")
</pallas_src>

<mosaic_0001>
module attributes {stable_mosaic.version = 11 : i64} {
  func.func @_pooling_kernel(%arg0: i32, %arg1: i32, %arg2: memref<8x8x16xf32, #tpu.memory_space<vmem>>, %arg3: memref<8x16xf32, #tpu.memory_space<vmem>>) attributes {dimension_semantics = [#tpu.dimension_semantics<parallel>, #tpu.dimension_semantics<parallel>], iteration_bounds = array<i64: 1, 1>, scalar_prefetch = 0 : i64, scratch_operands = 0 : i64, tpu.core_type = #tpu.core_type<tc>, window_params = [{transform_indices = @transform_0, window_bounds = array<i64: 8, 8, 16>}, {transform_indices = @transform_1, window_bounds = array<i64: 8, 16>}]} {
    %c0 = arith.constant 0 : index
    %c0_0 = arith.constant 0 : index
    %c0_1 = arith.constant 0 : index
    %0 = vector.load %arg2[%c0, %c0_0, %c0_1] : memref<8x8x16xf32, #tpu.memory_space<vmem>>, vector<8x8x16xf32>
    %cst = arith.constant dense<0xFF800000> : vector<8x16xf32>
    %1 = vector.multi_reduction <maximumf>, %0, %cst [1] : vector<8x8x16xf32> to vector<8x16xf32>
    %cst_2 = arith.constant dense<0.000000e+00> : vector<8x16xf32>
    %2 = vector.multi_reduction <add>, %0, %cst_2 [1] : vector<8x8x16xf32> to vector<8x16xf32>
    %cst_3 = arith.constant 1.250000e-01 : f32
    %3 = vector.broadcast %cst_3 : f32 to vector<8x16xf32>
    %4 = arith.mulf %2, %3 : vector<8x16xf32>
    %5 = arith.addf %1, %4 : vector<8x16xf32>
    %c0_4 = arith.constant 0 : index
    %c0_5 = arith.constant 0 : index
    %6 = vector.load %arg3[%c0_4, %c0_5] : memref<8x16xf32, #tpu.memory_space<vmem>>, vector<8x16xf32>
    tpu.vector_store %arg3[%c0_4, %c0_5], %5 {strides = array<i32>} : memref<8x16xf32, #tpu.memory_space<vmem>>, vector<8x16xf32>,
    return
  }
  func.func @transform_0(%arg0: i32, %arg1: i32) -> (i32, i32, i32) {
    %c0_i32 = arith.constant 0 : i32
    %c0_i32_0 = arith.constant 0 : i32
    return %arg0, %c0_i32, %arg1 : i32, i32, i32
  }
  func.func @transform_1(%arg0: i32, %arg1: i32) -> (i32, i32) {
    %c0_i32 = arith.constant 0 : i32
    return %arg0, %arg1 : i32, i32
  }
}

</mosaic_0001>

<llo_original>
// kernel: tpu_custom_call.1
$region0: #{tpu_custom_call.1}
  #allocation0 [shape = 'u32[]', space=smem, size = 0x4, offset = 0x4, fixed_abs, tag = 'smem constant byte address 0x4 - core index']
  #allocation1 [shape = 'u32[144,128]{1,0:T(1,128)}', space=vmem, size = 0x12000, scoped, tag = 'internal scratch']
  %s0 = inlined_call_operand.hbm [shape: f32[8,8,16], index: 0, kind: input, shape index: {}]
  %s1 = inlined_call_operand.hbm [shape: f32[8,16], index: 1, kind: output, shape index: {}]
  %s2 = sld [smem:[#allocation0]]
  $region18: #{tpu_custom_call.1} parent=0
    _
  %s4 = ssub.s32 1, %s2
  %s5 = scalar_select 0, %s4, %s2
  $region1: #{tpu_custom_call.1} parent=0
    #allocation2 [shape = 'u8[32768]{0}', space=vmem, size = 0x8000, scoped, tag = 'input window, operand 0, single buffered']
    #allocation3 [shape = 's32[1]{0}', space=sflag, size = 0x4, scoped, tag = 'scoped memory for tpu_custom_call.1']
    #allocation4 [shape = 's32[1]{0}', space=sflag, size = 0x4, scoped, tag = 'scoped memory for tpu_custom_call.1']
    #allocation5 [shape = 'u8[4096]{0}', space=vmem, size = 0x1000, scoped, tag = 'output window, operand 0, single buffered']
    %6 = vsyncpa [#allocation3], 0
    %7 = vsyncpa [#allocation4], 0
    // Predicated region
    $region2: #{tpu_custom_call.1} parent=1 // pred_check
      _
    $region3: #{tpu_custom_call.1} parent=1 // pred_check_branch
      %9 = sbr.rel (0) target = $region5
    $region4: #{tpu_custom_call.1} parent=1 // pred_region
      %s11 = ssub.s32 1024, 1024
      %12 = vsyncadd [#allocation3], %s11
      %s13 = sshll.u32 [#allocation2], 4
      %s14 = int_to_ptr.vmem [resolvable:$true] %s13
      %19 = dma.hbm_to_vmem [thread:$0]  %s0, 1024, %s14, [#allocation3], 128, 128, 8
    $region5: #{tpu_custom_call.1} parent=1 // pred_fallthru
      _
    // Predicated region
    $region6: #{tpu_custom_call.1} parent=1 // pred_check
      _
    $region7: #{tpu_custom_call.1} parent=1 // pred_check_branch
      %21 = sbr.rel (0) target = $region9
    $region8: #{tpu_custom_call.1} parent=1 // pred_region
      %22 = dma.done [#allocation3], 1024
    $region9: #{tpu_custom_call.1} parent=1 // pred_fallthru
      _
    %v23 = vld [vmem:[#allocation2] sm:$0xff]
    %v24 = vld [vmem:[#allocation2 + $0x8] sm:$0xff]
    %v25 = vld [vmem:[#allocation2 + $0x10] sm:$0xff]
    %v26 = vld [vmem:[#allocation2 + $0x18] sm:$0xff]
    %v27 = vld [vmem:[#allocation2 + $0x20] sm:$0xff]
    %v28 = vld [vmem:[#allocation2 + $0x28] sm:$0xff]
    %v29 = vld [vmem:[#allocation2 + $0x30] sm:$0xff]
    %v30 = vld [vmem:[#allocation2 + $0x38] sm:$0xff]
    %vm31 = vcmask 130048
    %v32 = vsel %vm31, %v23, -inf
    %v33 = vrot.slane %v32, 4
    %v34 = vmax.f32 %v32, %v33
    %v35 = vrot.slane %v34, 2
    %v36 = vmax.f32 %v34, %v35
    %v37 = vrot.slane %v36, 1
    %v38 = vmax.f32 %v36, %v37
    %v39 = vsel %vm31, %v24, -inf
    %v40 = vrot.slane %v39, 4
    %v41 = vmax.f32 %v39, %v40
    %v42 = vrot.slane %v41, 2
    %v43 = vmax.f32 %v41, %v42
    %v44 = vrot.slane %v43, 1
    %v45 = vmax.f32 %v43, %v44
    %v46 = vsel %vm31, %v25, -inf
    %v47 = vrot.slane %v46, 4
    %v48 = vmax.f32 %v46, %v47
    %v49 = vrot.slane %v48, 2
    %v50 = vmax.f32 %v48, %v49
    %v51 = vrot.slane %v50, 1
    %v52 = vmax.f32 %v50, %v51
    %v53 = vsel %vm31, %v26, -inf
    %v54 = vrot.slane %v53, 4
    %v55 = vmax.f32 %v53, %v54
    %v56 = vrot.slane %v55, 2
    %v57 = vmax.f32 %v55, %v56
    %v58 = vrot.slane %v57, 1
    %v59 = vmax.f32 %v57, %v58
    %v60 = vsel %vm31, %v27, -inf
    %v61 = vrot.slane %v60, 4
    %v62 = vmax.f32 %v60, %v61
    %v63 = vrot.slane %v62, 2
    %v64 = vmax.f32 %v62, %v63
    %v65 = vrot.slane %v64, 1
    %v66 = vmax.f32 %v64, %v65
    %v67 = vsel %vm31, %v28, -inf
    %v68 = vrot.slane %v67, 4
    %v69 = vmax.f32 %v67, %v68
    %v70 = vrot.slane %v69, 2
    %v71 = vmax.f32 %v69, %v70
    %v72 = vrot.slane %v71, 1
    %v73 = vmax.f32 %v71, %v72
    %v74 = vsel %vm31, %v29, -inf
    %v75 = vrot.slane %v74, 4
    %v76 = vmax.f32 %v74, %v75
    %v77 = vrot.slane %v76, 2
    %v78 = vmax.f32 %v76, %v77
    %v79 = vrot.slane %v78, 1
    %v80 = vmax.f32 %v78, %v79
    %v81 = vsel %vm31, %v30, -inf
    %v82 = vrot.slane %v81, 4
    %v83 = vmax.f32 %v81, %v82
    %v84 = vrot.slane %v83, 2
    %v85 = vmax.f32 %v83, %v84
    %v86 = vrot.slane %v85, 1
    %v87 = vmax.f32 %v85, %v86
    %v88 = vsel %vm31, %v23, 0.0
    %v89 = vrot.slane %v88, 4
    %v90 = vadd.f32 %v88, %v89
    %v91 = vrot.slane %v90, 2
    %v92 = vadd.f32 %v90, %v91
    %v93 = vrot.slane %v92, 1
    %v94 = vadd.f32 %v92, %v93
    %v95 = vsel %vm31, %v24, 0.0
    %v96 = vrot.slane %v95, 4
    %v97 = vadd.f32 %v95, %v96
    %v98 = vrot.slane %v97, 2
    %v99 = vadd.f32 %v97, %v98
    %v100 = vrot.slane %v99, 1
    %v101 = vadd.f32 %v99, %v100
    %v102 = vsel %vm31, %v25, 0.0
    %v103 = vrot.slane %v102, 4
    %v104 = vadd.f32 %v102, %v103
    %v105 = vrot.slane %v104, 2
    %v106 = vadd.f32 %v104, %v105
    %v107 = vrot.slane %v106, 1
    %v108 = vadd.f32 %v106, %v107
    %v109 = vsel %vm31, %v26, 0.0
    %v110 = vrot.slane %v109, 4
    %v111 = vadd.f32 %v109, %v110
    %v112 = vrot.slane %v111, 2
    %v113 = vadd.f32 %v111, %v112
    %v114 = vrot.slane %v113, 1
    %v115 = vadd.f32 %v113, %v114
    %v116 = vsel %vm31, %v27, 0.0
    %v117 = vrot.slane %v116, 4
    %v118 = vadd.f32 %v116, %v117
    %v119 = vrot.slane %v118, 2
    %v120 = vadd.f32 %v118, %v119
    %v121 = vrot.slane %v120, 1
    %v122 = vadd.f32 %v120, %v121
    %v123 = vsel %vm31, %v28, 0.0
    %v124 = vrot.slane %v123, 4
    %v125 = vadd.f32 %v123, %v124
    %v126 = vrot.slane %v125, 2
    %v127 = vadd.f32 %v125, %v126
    %v128 = vrot.slane %v127, 1
    %v129 = vadd.f32 %v127, %v128
    %v130 = vsel %vm31, %v29, 0.0
    %v131 = vrot.slane %v130, 4
    %v132 = vadd.f32 %v130, %v131
    %v133 = vrot.slane %v132, 2
    %v134 = vadd.f32 %v132, %v133
    %v135 = vrot.slane %v134, 1
    %v136 = vadd.f32 %v134, %v135
    %v137 = vsel %vm31, %v30, 0.0
    %v138 = vrot.slane %v137, 4
    %v139 = vadd.f32 %v137, %v138
    %v140 = vrot.slane %v139, 2
    %v141 = vadd.f32 %v139, %v140
    %v142 = vrot.slane %v141, 1
    %v143 = vadd.f32 %v141, %v142
    %v144 = vmul.f32 %v94, 0.125
    %v145 = vmul.f32 %v101, 0.125
    %v146 = vmul.f32 %v108, 0.125
    %v147 = vmul.f32 %v115, 0.125
    %v148 = vmul.f32 %v122, 0.125
    %v149 = vmul.f32 %v129, 0.125
    %v150 = vmul.f32 %v136, 0.125
    %v151 = vmul.f32 %v143, 0.125
    %v152 = vadd.f32 %v38, %v144
    %v153 = vadd.f32 %v45, %v145
    %v154 = vadd.f32 %v52, %v146
    %v155 = vadd.f32 %v59, %v147
    %v156 = vadd.f32 %v66, %v148
    %v157 = vadd.f32 %v73, %v149
    %v158 = vadd.f32 %v80, %v150
    %v159 = vadd.f32 %v87, %v151
    %vm168 = vcmask 1041409
    %v169 = vsel %vm168, %v153, %v152
    %vm170 = vcmask 1042434
    %v171 = vsel %vm170, %v154, %v169
    %vm172 = vcmask 1043459
    %v173 = vsel %vm172, %v155, %v171
    %vm174 = vcmask 1044484
    %v175 = vsel %vm174, %v156, %v173
    %vm176 = vcmask 1045509
    %v177 = vsel %vm176, %v157, %v175
    %vm178 = vcmask 1046534
    %v179 = vsel %vm178, %v158, %v177
    %vm180 = vcmask 1047559
    %v181 = vsel %vm180, %v159, %v179
    %183 = vst.msk [vmem:[#allocation5] sm:$0xff] %vm31, %v181
    // Predicated region
    $region10: #{tpu_custom_call.1} parent=1 // pred_check
      _
    $region11: #{tpu_custom_call.1} parent=1 // pred_check_branch
      %185 = sbr.rel (0) target = $region13
    $region12: #{tpu_custom_call.1} parent=1 // pred_region
      %s187 = ssub.s32 128, 128
      %188 = vsyncadd [#allocation4], %s187
      %s190 = sshll.u32 [#allocation5], 4
      %s191 = int_to_ptr.vmem [resolvable:$true] %s190
      %193 = dma.vmem_to_hbm [thread:$0]  %s191, 128, %s1, [#allocation4]
    $region13: #{tpu_custom_call.1} parent=1 // pred_fallthru
      _
    // Predicated region
    $region14: #{tpu_custom_call.1} parent=1 // pred_check
      _
    $region15: #{tpu_custom_call.1} parent=1 // pred_check_branch
      %195 = sbr.rel (0) target = $region17
    $region16: #{tpu_custom_call.1} parent=1 // pred_region
      %196 = dma.done [#allocation4], 128
    $region17: #{tpu_custom_call.1} parent=1 // pred_fallthru
      _
    %197 = vsyncpa [#allocation3], 1
    %198 = vsyncpa [#allocation4], 1

</llo_original>
